<compile_context>
chip_gen: v6e
topology: v6e:2x2x1
jax: 0.10.0
libtpu: 0.0.40
codegen_flags: <defaults>
</compile_context>

<pallas_src>
import math

import jax
import jax.numpy as jnp
from jax import lax
from jax.experimental import pallas as pl
from jax.experimental.pallas import tpu as pltpu


# ----------------------------------------------------------------------------
# Kernel 1: global average / max pooling over the spatial dims (per channel).
# ----------------------------------------------------------------------------
def _make_pool_kernel(inv_hw):
    def kernel(x_ref, out_ref):
        # x_ref  : VMEM (1, C, S)   spatial chunk of the input
        # out_ref: VMEM (1, 2, C)   row 0 = running sum (avg at the end), row 1 = running max
        k = pl.program_id(1)
        xv = x_ref[0].astype(jnp.float32)                 # (C, S)
        psum = jnp.sum(xv, axis=-1)                        # (C,)
        pmax = jnp.max(xv, axis=-1)                        # (C,)

        @pl.when(k == 0)
        def _():
            out_ref[0, 0, :] = psum
            out_ref[0, 1, :] = pmax

        @pl.when(k > 0)
        def _():
            out_ref[0, 0, :] = out_ref[0, 0, :] + psum
            out_ref[0, 1, :] = jnp.maximum(out_ref[0, 1, :], pmax)

        @pl.when(k == pl.num_programs(1) - 1)
        def _():
            out_ref[0, 0, :] = out_ref[0, 0, :] * inv_hw

    return kernel


def _pick_spatial_chunk(hw, c, target_bytes=4 << 20):
    """Largest multiple-of-128 divisor of hw whose (c, chunk) f32 block fits target_bytes."""
    if hw % 128 != 0:
        return hw                      # cannot tile the lane dim -> take the whole thing
    max_s = (target_bytes // (4 * max(c, 1))) // 128 * 128
    if max_s < 128:
        max_s = 128
    if hw <= max_s:
        return hw
    for cand in range(max_s, 127, -128):
        if hw % cand == 0:
            return cand
    return hw


def channel_pool(x):
    """Per-channel global avg and max over spatial dims. Returns (avg, max), each (B, C) f32."""
    B, C, H, W = x.shape
    hw = H * W
    x2 = x.reshape(B, C, hw)
    S = _pick_spatial_chunk(hw, C)
    n_chunks = hw // S
    pooled = pl.pallas_call(
        _make_pool_kernel(1.0 / float(hw)),
        out_shape=jax.ShapeDtypeStruct((B, 2, C), jnp.float32),   # lane-dense: C on lanes
        grid_spec=pltpu.PrefetchScalarGridSpec(
            num_scalar_prefetch=0,
            grid=(B, n_chunks),
            in_specs=[pl.BlockSpec((1, C, S), lambda b, k: (b, 0, k))],
            out_specs=pl.BlockSpec((1, 2, C), lambda b, k: (b, 0, 0))),
        compiler_params=pltpu.CompilerParams(
            dimension_semantics=("parallel", "arbitrary")),
    )(x2)
    return pooled[:, 0, :], pooled[:, 1, :]                       # (B, C) each


# ----------------------------------------------------------------------------
# Kernel 2: channel gating, per-branch channel reductions, shared 7x7 conv
#           (+ eval-mode BN, ReLU, sigmoid), gating and residual ReLU fusion.
# ----------------------------------------------------------------------------
def _make_spatial_kernel(C, H, W):
    HW = H * W
    OFF = 3 * W + 4                  # offset of the map inside the flat padded buffer
    PADLEN = HW + 6 * W + 8          # 3 zero rows above/below + +/-3 column slack

    def kernel(x_ref, g_ref, m_ref, w_ref, s_ref, out_ref, pad_ref):
        # x_ref   : VMEM (1, C, HW)      input features (flattened spatial), lane-dense
        # g_ref   : VMEM (1, C, 2)  f32  [:, 0]=mask*att (important), [:, 1]=(1-mask)*att
        # m_ref   : VMEM (7, HW)    f32  column-validity mask per horizontal tap kx
        # w_ref   : SMEM (2, 49)    f32  7x7 conv weights [in_chan, ky*7+kx]
        # s_ref   : SMEM (5,)       f32  [conv_bias, bn_scale, bn_shift, 1/C_im, 1/C_sub]
        # out_ref : VMEM (1, C, HW)      output, written in the input dtype
        # pad_ref : VMEM (4, PADLEN) f32 scratch: flat, vertically zero-padded maps
        x = x_ref[0].astype(jnp.float32)                   # (C, HW)
        gim = g_ref[0, :, 0:1]                              # (C, 1) important-channel gate
        gsub = g_ref[0, :, 1:2]                             # (C, 1) sub-important gate
        conv_bias = s_ref[0]
        bn_scale = s_ref[1]
        bn_shift = s_ref[2]
        inv_c_im = s_ref[3]
        inv_c_sub = s_ref[4]

        # Channel gating, lane-dense over the full 128-lane width even when W < 128.
        f_im = gim * x
        f_sub = gsub * x
        # NOTE(perf review "drop one reduction pass"): both max-reductions need the full
        # f_im / f_sub products anyway, so deriving avg_sub from sum(att*x) - sum(f_im)
        # would ADD a C*H*W pass rather than remove one; keep the direct form.
        avg_im = jnp.sum(f_im, axis=0, keepdims=True) * inv_c_im      # (1, HW)
        max_im = jnp.max(f_im, axis=0, keepdims=True)                  # (1, HW)
        avg_sub = jnp.sum(f_sub, axis=0, keepdims=True) * inv_c_sub
        max_sub = jnp.max(f_sub, axis=0, keepdims=True)

        # Flat, vertically zero-padded 4-map stack in a VMEM scratch (no concatenated
        # padded value, no slab copies). Only the borders are zeroed; the interior is
        # fully overwritten every grid step.
        pad_ref[:, pl.ds(0, OFF)] = jnp.zeros((4, OFF), jnp.float32)
        pad_ref[:, pl.ds(OFF + HW, PADLEN - OFF - HW)] = jnp.zeros(
            (4, PADLEN - OFF - HW), jnp.float32)
        pad_ref[0:1, pl.ds(OFF, HW)] = avg_im
        pad_ref[1:2, pl.ds(OFF, HW)] = max_im
        pad_ref[2:3, pl.ds(OFF, HW)] = avg_sub
        pad_ref[3:4, pl.ds(OFF, HW)] = max_sub

        # Shared 7x7 conv (padding=3), both branches at once, in the flat layout.
        # Each tap is a static window load from the scratch ref (bounded live ranges);
        # the precomputed per-kx column mask supplies the horizontal zero padding.
        acc_im = jnp.full((1, HW), conv_bias, jnp.float32)
        acc_sub = jnp.full((1, HW), conv_bias, jnp.float32)
        for ky in range(7):
            for kx in range(7):
                start = ky * W + kx + 1            # == OFF + (ky-3)*W + (kx-3)
                win = pad_ref[:, pl.ds(start, HW)]                 # (4, HW)
                w_avg = w_ref[0, ky * 7 + kx]
                w_max = w_ref[1, ky * 7 + kx]
                colmask = m_ref[kx:kx + 1, :]                       # (1, HW)
                t_im = w_avg * win[0:1, :] + w_max * win[1:2, :]
                t_sub = w_avg * win[2:3, :] + w_max * win[3:4, :]
                acc_im = acc_im + t_im * colmask
                acc_sub = acc_sub + t_sub * colmask

        def squash(acc):
            # eval-mode BatchNorm2d folded into scale/shift, then ReLU, then sigmoid
            return jax.nn.sigmoid(jnp.maximum(acc * bn_scale + bn_shift, 0.0))

        im_map = squash(acc_im)                                     # (1, HW)
        sub_map = squash(acc_sub)

        # Fused gating + residual + ReLU; single lane-dense store in the input dtype.
        combined = gim * im_map + gsub * sub_map                    # (C, HW)
        out_ref[0] = jnp.maximum(combined * x + x, 0.0).astype(out_ref.dtype)

    return kernel, PADLEN


# ----------------------------------------------------------------------------
# Parameters (deterministic, PyTorch-default-style init)
# ----------------------------------------------------------------------------
def init_params(key, in_channel):
    k_val = math.log(in_channel, 2) / 2 + 1 / 2
    K = int(k_val) + 1 if int(k_val) % 2 == 0 else int(k_val)   # conv1d kernel size
    k1, k2, k3, k4 = jax.random.split(key, 4)
    b1 = 1.0 / math.sqrt(1 * K)          # conv1d fan_in = 1 * K
    b2 = 1.0 / math.sqrt(2 * 7 * 7)      # conv2d fan_in = 2 * 7 * 7
    return dict(
        alpha=jnp.array(0.5, jnp.float32),
        beta=jnp.array(0.5, jnp.float32),
        conv1d_w=jax.random.uniform(k1, (K,), jnp.float32, -b1, b1),
        conv1d_b=jax.random.uniform(k2, (), jnp.float32, -b1, b1),
        conv2d_w=jax.random.uniform(k3, (2, 7, 7), jnp.float32, -b2, b2),
        conv2d_b=jax.random.uniform(k4, (), jnp.float32, -b2, b2),
        bn_gamma=jnp.array(1.0, jnp.float32),
        bn_beta=jnp.array(0.0, jnp.float32),
        bn_mean=jnp.array(0.0, jnp.float32),
        bn_var=jnp.array(1.0, jnp.float32),
    )


# ----------------------------------------------------------------------------
# Full CASA_HAM forward
# ----------------------------------------------------------------------------
def casa_ham_forward(x, params, separation_rate=0.6):
    B, C, H, W = x.shape
    HW = H * W

    # --- ChannelAttention_HAM (Pallas pooling + tiny conv1d over channels in glue) ----
    avg, mx = channel_pool(x)                                   # (B, C) each
    Fc = 0.5 * (mx + avg) + params['alpha'] * avg + params['beta'] * mx

    K = params['conv1d_w'].shape[0]
    pad = K // 2
    Fc_p = jnp.pad(Fc, ((0, 0), (pad, pad)))
    y = params['conv1d_b'] + sum(params['conv1d_w'][k] * Fc_p[:, k:k + C]
                                 for k in range(K))
    att = jax.nn.sigmoid(y)                                     # (B, C) channel attention

    # --- SpatialAttention_HAM setup (index logic in glue) ------------------------------
    h = separation_rate * C
    C_im = int(h) if int(h) % 2 == 0 else int(h) + 1
    C_subim = C - C_im
    if C_im <= 0 or C_subim <= 0:
        raise ValueError(
            f"separation_rate={separation_rate} with C={C} gives C_im={C_im}, "
            f"C_subim={C_subim}; both must be > 0 (same failure as the PyTorch module).")
    _, topk_idx = lax.top_k(att, C_im)                          # torch.topk over channels
    im_mask = jnp.zeros((B, C), jnp.float32).at[
        jnp.arange(B)[:, None], topk_idx].set(1.0)              # scatter(1, topk, 1)

    # Per-channel gates (combined mask * attention): [:, :, 0] important, [:, :, 1] sub.
    gates = jnp.stack([im_mask * att, (1.0 - im_mask) * att],
                      axis=-1).astype(jnp.float32)              # (B, C, 2)

    # Column-validity masks for the 7 horizontal taps of the flattened 7x7 conv
    # (horizontal zero padding).  Shared across the batch grid.
    col = jnp.arange(HW, dtype=jnp.int32) % W
    kxs = jnp.arange(7, dtype=jnp.int32)[:, None]
    colmask = (((col[None, :] + kxs - 3) >= 0)
               & ((col[None, :] + kxs - 3) < W)).astype(jnp.float32)     # (7, HW)

    # TODO(synk): BatchNorm2d is reproduced in eval mode (running stats folded into
    #             scale/shift); train-mode batch statistics are not reproduced.
    bn_eps = 1e-5
    bn_scale = params['bn_gamma'] / jnp.sqrt(params['bn_var'] + bn_eps)
    bn_shift = params['bn_beta'] - params['bn_mean'] * bn_scale
    scal = jnp.stack([params['conv2d_b'], bn_scale, bn_shift,
                      jnp.asarray(1.0 / C_im, jnp.float32),
                      jnp.asarray(1.0 / C_subim, jnp.float32)]).astype(jnp.float32)
    w2 = params['conv2d_w'].reshape(2, 49).astype(jnp.float32)

    kernel, padlen = _make_spatial_kernel(C, H, W)

    # Double-buffered block footprint (+ scratch) -> safe, explicit VMEM limit (<= 64 MiB
    # so the same setting works on v7x as well as v5e/v6e).
    isz = x.dtype.itemsize
    need = (2 * C * HW * isz            # x blocks (double-buffered)
            + 2 * C * HW * isz          # out blocks
            + 2 * C * 2 * 4             # gates
            + 2 * 7 * HW * 4            # column masks
            + 4 * padlen * 4)           # scratch
    vmem_limit = int(min(64 << 20, max(32 << 20, 2 * need)))
    # TODO(synk): for shapes where 16*C*H*W bytes exceeds ~48 MiB (v7x), split kernel 2
    #             into a C-tiled reduction pass + a C-tiled gating/fusion pass, which
    #             would also give a second 'parallel' axis for megacore when B is small.

    x2 = x.reshape(B, C, HW)
    out = pl.pallas_call(
        kernel,
        out_shape=jax.ShapeDtypeStruct((B, C, HW), x.dtype),    # output in input dtype
        grid_spec=pltpu.PrefetchScalarGridSpec(
            num_scalar_prefetch=0,
            grid=(B,),
            in_specs=[
                pl.BlockSpec((1, C, HW), lambda b: (b, 0, 0)),          # x (lane-dense)
                pl.BlockSpec((1, C, 2), lambda b: (b, 0, 0)),           # gates
                pl.BlockSpec((7, HW), lambda b: (0, 0)),                # column masks
                pl.BlockSpec(memory_space=pltpu.MemorySpace.SMEM),      # conv2d weights
                pl.BlockSpec(memory_space=pltpu.MemorySpace.SMEM),      # scalars
            ],
            out_specs=pl.BlockSpec((1, C, HW), lambda b: (b, 0, 0)),
            scratch_shapes=[pltpu.VMEM((4, padlen), jnp.float32)]),
        compiler_params=pltpu.CompilerParams(
            dimension_semantics=("parallel",),
            vmem_limit_bytes=vmem_limit),
    )(x2, gates, colmask, w2, scal)
    return out.reshape(B, C, H, W)


# ----------------------------------------------------------------------------
# Pure-JAX reference (mirrors the PyTorch forward) for a correctness check
# ----------------------------------------------------------------------------
def _reference_forward(x, params, separation_rate=0.6):
    B, C, H, W = x.shape
    avg = jnp.mean(x, axis=(2, 3))
    mx = jnp.max(x, axis=(2, 3))
    Fc = 0.5 * (mx + avg) + params['alpha'] * avg + params['beta'] * mx
    K = params['conv1d_w'].shape[0]
    pad = K // 2
    Fc_p = jnp.pad(Fc, ((0, 0), (pad, pad)))
    y = params['conv1d_b'] + sum(params['conv1d_w'][k] * Fc_p[:, k:k + C]
                                 for k in range(K))
    att = jax.nn.sigmoid(y)
    refined = att[:, :, None, None] * x
    h = separation_rate * C
    C_im = int(h) if int(h) % 2 == 0 else int(h) + 1
    C_sub = C - C_im
    _, idx = lax.top_k(att, C_im)
    im_mask = jnp.zeros((B, C), jnp.float32).at[
        jnp.arange(B)[:, None], idx].set(1.0)
    sub_mask = 1.0 - im_mask
    im_f = im_mask[:, :, None, None] * refined
    sub_f = sub_mask[:, :, None, None] * refined
    bn_scale = params['bn_gamma'] / jnp.sqrt(params['bn_var'] + 1e-5)
    bn_shift = params['bn_beta'] - params['bn_mean'] * bn_scale

    def branch(f, scale):
        avgo = jnp.mean(f, axis=1, keepdims=True) * scale
        maxo = jnp.max(f, axis=1, keepdims=True)
        inp = jnp.concatenate([avgo, maxo], axis=1)
        conv = lax.conv_general_dilated(
            inp, params['conv2d_w'][None], (1, 1), [(3, 3), (3, 3)],
            dimension_numbers=('NCHW', 'OIHW', 'NCHW')) + params['conv2d_b']
        yb = jnp.maximum(conv * bn_scale + bn_shift, 0.0)
        return jax.nn.sigmoid(yb)

    im = branch(im_f, C / C_im)
    sub = branch(sub_f, C / C_sub)
    out = im * im_f + sub * sub_f
    return jnp.maximum(out + x, 0.0)


if __name__ == "__main__":
    B, C, H, W = 2, 4, 16, 16
    key = jax.random.PRNGKey(0)
    kx_, kp = jax.random.split(key)
    x = jax.random.normal(kx_, (B, C, H, W), jnp.float32)
    params = init_params(kp, C)

    out = casa_ham_forward(x, params)
    out = jax.block_until_ready(out)

    ref = _reference_forward(x, params)
    assert out.shape == (B, C, H, W)
    assert bool(jnp.allclose(out, ref, atol=1e-4, rtol=1e-4)), \
        float(jnp.max(jnp.abs(out - ref)))
    print("KERNEL_OK")
</pallas_src>

<mosaic_0001>
module attributes {stable_mosaic.version = 11 : i64} {
  func.func @kernel(%arg0: i32, %arg1: i32, %arg2: memref<1x4x256xf32, #tpu.memory_space<vmem>>, %arg3: memref<1x2x4xf32, #tpu.memory_space<vmem>>) attributes {dimension_semantics = [#tpu.dimension_semantics<parallel>, #tpu.dimension_semantics<arbitrary>], iteration_bounds = array<i64: 2, 1>, scalar_prefetch = 0 : i64, scratch_operands = 0 : i64, tpu.core_type = #tpu.core_type<tc>, window_params = [{transform_indices = @transform_0, window_bounds = array<i64: 1, 4, 256>}, {transform_indices = @transform_1, window_bounds = array<i64: 1, 2, 4>}]} {
    %c0 = arith.constant 0 : index
    %c0_0 = arith.constant 0 : index
    %c0_1 = arith.constant 0 : index
    %0 = vector.load %arg2[%c0, %c0_0, %c0_1] : memref<1x4x256xf32, #tpu.memory_space<vmem>>, vector<1x4x256xf32>
    %1 = vector.shape_cast %0 : vector<1x4x256xf32> to vector<4x256xf32>
    %cst = arith.constant dense<0.000000e+00> : vector<4xf32>
    %2 = vector.multi_reduction <add>, %1, %cst [1] : vector<4x256xf32> to vector<4xf32>
    %cst_2 = arith.constant dense<0xFF800000> : vector<4xf32>
    %3 = vector.multi_reduction <maximumf>, %1, %cst_2 [1] : vector<4x256xf32> to vector<4xf32>
    %c0_i32 = arith.constant 0 : i32
    %4 = arith.cmpi eq, %arg1, %c0_i32 : i32
    %5 = arith.extui %4 : i1 to i32
    %c0_i32_3 = arith.constant 0 : i32
    %6 = arith.cmpi ne, %5, %c0_i32_3 : i32
    scf.if %6 {
      %c0_8 = arith.constant 0 : index
      %c0_9 = arith.constant 0 : index
      %c0_10 = arith.constant 0 : index
      %13 = vector.load %arg3[%c0_8, %c0_9, %c0_10] : memref<1x2x4xf32, #tpu.memory_space<vmem>>, vector<1x1x4xf32>
      %14 = vector.shape_cast %13 : vector<1x1x4xf32> to vector<4xf32>
      %15 = vector.shape_cast %2 : vector<4xf32> to vector<1x1x4xf32>
      tpu.vector_store %arg3[%c0_8, %c0_9, %c0_10], %15 {strides = array<i32>} : memref<1x2x4xf32, #tpu.memory_space<vmem>>, vector<1x1x4xf32>,
      %c0_11 = arith.constant 0 : index
      %c1 = arith.constant 1 : index
      %c0_12 = arith.constant 0 : index
      %16 = vector.load %arg3[%c0_11, %c1, %c0_12] : memref<1x2x4xf32, #tpu.memory_space<vmem>>, vector<1x1x4xf32>
      %17 = vector.shape_cast %16 : vector<1x1x4xf32> to vector<4xf32>
      %18 = vector.shape_cast %3 : vector<4xf32> to vector<1x1x4xf32>
      tpu.vector_store %arg3[%c0_11, %c1, %c0_12], %18 {strides = array<i32>} : memref<1x2x4xf32, #tpu.memory_space<vmem>>, vector<1x1x4xf32>,
    } else {
    }
    %c0_i32_4 = arith.constant 0 : i32
    %7 = arith.cmpi sgt, %arg1, %c0_i32_4 : i32
    %8 = arith.extui %7 : i1 to i32
    %c0_i32_5 = arith.constant 0 : i32
    %9 = arith.cmpi ne, %8, %c0_i32_5 : i32
    scf.if %9 {
      %c0_8 = arith.constant 0 : index
      %c0_9 = arith.constant 0 : index
      %c0_10 = arith.constant 0 : index
      %13 = vector.load %arg3[%c0_8, %c0_9, %c0_10] : memref<1x2x4xf32, #tpu.memory_space<vmem>>, vector<1x1x4xf32>
      %14 = vector.shape_cast %13 : vector<1x1x4xf32> to vector<4xf32>
      %15 = arith.addf %14, %2 : vector<4xf32>
      %c0_11 = arith.constant 0 : index
      %c0_12 = arith.constant 0 : index
      %c0_13 = arith.constant 0 : index
      %16 = vector.load %arg3[%c0_11, %c0_12, %c0_13] : memref<1x2x4xf32, #tpu.memory_space<vmem>>, vector<1x1x4xf32>
      %17 = vector.shape_cast %16 : vector<1x1x4xf32> to vector<4xf32>
      %18 = vector.shape_cast %15 : vector<4xf32> to vector<1x1x4xf32>
      tpu.vector_store %arg3[%c0_11, %c0_12, %c0_13], %18 {strides = array<i32>} : memref<1x2x4xf32, #tpu.memory_space<vmem>>, vector<1x1x4xf32>,
      %c0_14 = arith.constant 0 : index
      %c1 = arith.constant 1 : index
      %c0_15 = arith.constant 0 : index
      %19 = vector.load %arg3[%c0_14, %c1, %c0_15] : memref<1x2x4xf32, #tpu.memory_space<vmem>>, vector<1x1x4xf32>
      %20 = vector.shape_cast %19 : vector<1x1x4xf32> to vector<4xf32>
      %21 = arith.maximumf %20, %3 : vector<4xf32>
      %c0_16 = arith.constant 0 : index
      %c1_17 = arith.constant 1 : index
      %c0_18 = arith.constant 0 : index
      %22 = vector.load %arg3[%c0_16, %c1_17, %c0_18] : memref<1x2x4xf32, #tpu.memory_space<vmem>>, vector<1x1x4xf32>
      %23 = vector.shape_cast %22 : vector<1x1x4xf32> to vector<4xf32>
      %24 = vector.shape_cast %21 : vector<4xf32> to vector<1x1x4xf32>
      tpu.vector_store %arg3[%c0_16, %c1_17, %c0_18], %24 {strides = array<i32>} : memref<1x2x4xf32, #tpu.memory_space<vmem>>, vector<1x1x4xf32>,
    } else {
    }
    %c0_i32_6 = arith.constant 0 : i32
    %10 = arith.cmpi eq, %arg1, %c0_i32_6 : i32
    %11 = arith.extui %10 : i1 to i32
    %c0_i32_7 = arith.constant 0 : i32
    %12 = arith.cmpi ne, %11, %c0_i32_7 : i32
    scf.if %12 {
      %c0_8 = arith.constant 0 : index
      %c0_9 = arith.constant 0 : index
      %c0_10 = arith.constant 0 : index
      %13 = vector.load %arg3[%c0_8, %c0_9, %c0_10] : memref<1x2x4xf32, #tpu.memory_space<vmem>>, vector<1x1x4xf32>
      %14 = vector.shape_cast %13 : vector<1x1x4xf32> to vector<4xf32>
      %cst_11 = arith.constant 3.906250e-03 : f32
      %15 = vector.broadcast %cst_11 : f32 to vector<4xf32>
      %16 = arith.mulf %14, %15 : vector<4xf32>
      %c0_12 = arith.constant 0 : index
      %c0_13 = arith.constant 0 : index
      %c0_14 = arith.constant 0 : index
      %17 = vector.load %arg3[%c0_12, %c0_13, %c0_14] : memref<1x2x4xf32, #tpu.memory_space<vmem>>, vector<1x1x4xf32>
      %18 = vector.shape_cast %17 : vector<1x1x4xf32> to vector<4xf32>
      %19 = vector.shape_cast %16 : vector<4xf32> to vector<1x1x4xf32>
      tpu.vector_store %arg3[%c0_12, %c0_13, %c0_14], %19 {strides = array<i32>} : memref<1x2x4xf32, #tpu.memory_space<vmem>>, vector<1x1x4xf32>,
    } else {
    }
    return
  }
  func.func @transform_0(%arg0: i32, %arg1: i32) -> (i32, i32, i32) {
    %c0_i32 = arith.constant 0 : i32
    %c0_i32_0 = arith.constant 0 : i32
    return %arg0, %c0_i32, %arg1 : i32, i32, i32
  }
  func.func @transform_1(%arg0: i32, %arg1: i32) -> (i32, i32, i32) {
    %c0_i32 = arith.constant 0 : i32
    %c0_i32_0 = arith.constant 0 : i32
    %c0_i32_1 = arith.constant 0 : i32
    return %arg0, %c0_i32, %c0_i32_0 : i32, i32, i32
  }
}

</mosaic_0001>

<llo_original>
// kernel: tpu_custom_call.1
$region0: #{tpu_custom_call.1}
  #allocation0 [shape = 'u32[]', space=smem, size = 0x4, offset = 0x4, fixed_abs, tag = 'smem constant byte address 0x4 - core index']
  #allocation1 [shape = 'u32[144,128]{1,0:T(1,128)}', space=vmem, size = 0x12000, scoped, tag = 'internal scratch']
  %s0 = inlined_call_operand.hbm [shape: f32[2,4,256], index: 0, kind: input, shape index: {}]
  %s1 = inlined_call_operand.hbm [shape: f32[2,2,4], index: 1, kind: output, shape index: {}]
  %s2 = sld [smem:[#allocation0]]
  $region53: #{tpu_custom_call.1} parent=0
    _
  %s4 = ssub.s32 1, %s2
  %s5 = scalar_select 0, %s4, %s2
  $region1: #{tpu_custom_call.1} parent=0
    #allocation2 [shape = 'u8[8192]{0}', space=vmem, size = 0x2000, scoped, tag = 'input window, operand 0']
    #allocation3 [shape = 's32[2]{0}', space=sflag, size = 0x8, scoped, tag = 'scoped memory for tpu_custom_call.1']
    #allocation4 [shape = 's32[2]{0}', space=sflag, size = 0x8, scoped, tag = 'scoped memory for tpu_custom_call.1']
    #allocation5 [shape = 'u8[2048]{0}', space=vmem, size = 0x800, scoped, tag = 'output window, operand 0']
    %6 = vsyncpa [#allocation3], 0
    %s7 = scalar_lea.sflag [#allocation3], 1
    %8 = vsyncpa %s7, 0
    %9 = vsyncpa [#allocation4], 0
    %s10 = scalar_lea.sflag [#allocation4], 1
    %11 = vsyncpa %s10, 0
    loop: start=0, step=1, limit=4
    $region2: #{tpu_custom_call.1} parent=1 // loop_pre_header
      _
    $region3: #{tpu_custom_call.1} parent=1 // loop_header
      %s13 = sphi 0, %s17
      %p14 = scmp.ge.s32.totalorder %s13, 4
      %s20 = sphi 0, %s32
      %s21 = sphi 0, %s28
      %s22 = sphi 0, %s20
      %s23 = sphi 0, %s21
      %s24 = sphi 0, %s22
      %s25 = sphi 0, %s23
      %s37 = sphi 0, %s39
      %s40 = sphi 0, %s37
      %s41 = sphi 0, %s40
      %s57 = sphi 0, %s41
      %s63 = sphi 0, %s65
      %s66 = sphi 0, %s63
      %s67 = sphi 0, %s66
      %s83 = sphi 0, %s67
    $region4: #{tpu_custom_call.1} parent=1 // loop_header_branch
      %16 = sbr.rel (%p14) target = $region8
    $region5: #{tpu_custom_call.1} parent=1 // loop_body
      %s18 = ssub.s32 %s13, 1
      %s19 = ssub.s32 %s13, 2
      %s26 = sadd.s32 1, %s21
      %p27 = scmp.ge.s32.totalorder %s26, 1
      %s28 = scalar_select %p27, 0, %s26
      %s29 = sadd.s32 1, %s20
      %s30 = scalar_select %p27, %s29, %s20
      %p31 = scmp.ge.s32.totalorder %s30, 2
      %s32 = scalar_select %p31, 0, %s30
      %s33 = ssub.s32 %s20, %s32
      %s34 = ssub.s32 %s21, %s28
      %s35 = sor.u32 %s33, %s34
      %p36 = scmp.eq.s32.totalorder %s35, 0
      %s38 = sadd.s32 %s37, 1
      %s39 = scalar_select %p36, %s37, %s38
      %p42 = pneg %p36
      %p43 = scmp.eq.s32.totalorder %s13, 1
      %p44 = por %p42, %p43
      %p45 = scmp.ne.s32.totalorder %s37, %s40
      %p46 = scmp.eq.s32.totalorder %s13, 0
      %p47 = por %p45, %p46
      %p48 = scmp.ne.s32.totalorder %s37, %s40
      %p49 = scmp.eq.s32.totalorder %s18, 1
      %p50 = por %p48, %p49
      %p51 = scmp.ne.s32.totalorder %s40, %s41
      %p52 = scmp.eq.s32.totalorder %s18, 0
      %p53 = por %p51, %p52
      %p54 = scmp.ne.s32.totalorder %s40, %s41
      %p55 = scmp.eq.s32.totalorder %s19, 1
      %p56 = por %p54, %p55
      %p58 = scmp.ne.s32.totalorder %s41, %s57
      %p59 = scmp.eq.s32.totalorder %s19, 0
      %p60 = por %p58, %p59
      %s61 = ssub.s32 %s20, %s32
      %p62 = scmp.eq.s32.totalorder %s61, 0
      %s64 = sadd.s32 %s63, 1
      %s65 = scalar_select %p62, %s63, %s64
      %p68 = pneg %p62
      %p69 = scmp.eq.s32.totalorder %s13, 1
      %p70 = por %p68, %p69
      %p71 = scmp.ne.s32.totalorder %s63, %s66
      %p72 = scmp.eq.s32.totalorder %s13, 0
      %p73 = por %p71, %p72
      %p74 = scmp.ne.s32.totalorder %s63, %s66
      %p75 = scmp.eq.s32.totalorder %s18, 1
      %p76 = por %p74, %p75
      %p77 = scmp.ne.s32.totalorder %s66, %s67
      %p78 = scmp.eq.s32.totalorder %s18, 0
      %p79 = por %p77, %p78
      %p80 = scmp.ne.s32.totalorder %s66, %s67
      %p81 = scmp.eq.s32.totalorder %s19, 1
      %p82 = por %p80, %p81
      %p84 = scmp.ne.s32.totalorder %s67, %s83
      %p85 = scmp.eq.s32.totalorder %s19, 0
      %p86 = por %p84, %p85
      %p87 = scmp.le.s32.totalorder 1, %s13
      %p88 = scmp.lt.s32.totalorder %s13, 3
      %p89 = pnand %p87, %p88
      %p90 = pneg %p89
      // Predicated region
      $region9: #{tpu_custom_call.1} parent=5 // pred_check
        _
      $region10: #{tpu_custom_call.1} parent=5 // pred_check_branch
        %92 = sbr.rel (%p89) target = $region12
      $region11: #{tpu_custom_call.1} parent=5 // pred_region
        %s93 = ssub.s32 %s13, 1
      $region12: #{tpu_custom_call.1} parent=5 // pred_fallthru
        _
      %p94 = scmp.lt.s32.totalorder %s13, 2
      // Predicated region
      $region13: #{tpu_custom_call.1} parent=5 // pred_check
        %p95 = pneg %p94
      $region14: #{tpu_custom_call.1} parent=5 // pred_check_branch
        %97 = sbr.rel (%p95) target = $region16
      $region15: #{tpu_custom_call.1} parent=5 // pred_region
        // Predicated region
        $region17: #{tpu_custom_call.1} parent=15 // pred_check
          %p98 = pneg %p47
        $region18: #{tpu_custom_call.1} parent=15 // pred_check_branch
          %100 = sbr.rel (%p98) target = $region20
        $region19: #{tpu_custom_call.1} parent=15 // pred_region
          %s101 = sand.u32 %s37, 1
          %s102 = scalar_lea.sflag [#allocation3], %s101
          %s103 = sand.u32 %s37, 1
          %s104 = smul.addr %s103, 8
          %s105 = scalar_lea.vmem [#allocation2], %s104
          %s106 = smul.u32 2, %s21
          %s108 = ssub.s32 128, 128
          %109 = vsyncadd %s102, %s108
          %s110 = smul.addr %s20, 2
          %s111 = sadd.s32 %s106, %s110
          %s112 = smul.addr %s111, 64
          %s113 = scalar_lea.hbm %s0, %s112
          %s115 = sshll.u32 %s105, 4
          %s116 = int_to_ptr.vmem [resolvable:$true] %s115
          %118 = dma.hbm_to_vmem [thread:$0]  %s113, 128, %s116, %s102
        $region20: #{tpu_custom_call.1} parent=15 // pred_fallthru
          _
      $region16: #{tpu_custom_call.1} parent=5 // pred_fallthru
        _
      %p119 = scmp.le.s32.totalorder 1, %s13
      %p120 = scmp.lt.s32.totalorder %s13, 3
      %p121 = pnand %p119, %p120
      %p122 = pneg %p121
      // Predicated region
      $region21: #{tpu_custom_call.1} parent=5 // pred_check
        _
      $region22: #{tpu_custom_call.1} parent=5 // pred_check_branch
        %124 = sbr.rel (%p121) target = $region24
      $region23: #{tpu_custom_call.1} parent=5 // pred_region
        %s125 = ssub.s32 %s13, 1
        %s126 = sand.u32 %s40, 1
        %s127 = scalar_lea.sflag [#allocation3], %s126
        %s128 = sand.u32 %s40, 1
        %s129 = smul.addr %s128, 8
        %s130 = scalar_lea.vmem [#allocation2], %s129
        // Predicated region
        $region25: #{tpu_custom_call.1} parent=23 // pred_check
          %p131 = pneg %p53
        $region26: #{tpu_custom_call.1} parent=23 // pred_check_branch
          %133 = sbr.rel (%p131) target = $region28
        $region27: #{tpu_custom_call.1} parent=23 // pred_region
          %134 = dma.done %s127, 128
        $region28: #{tpu_custom_call.1} parent=23 // pred_fallthru
          _
        %s135 = sand.u32 %s40, 1
        %s136 = scalar_lea.sflag [#allocation3], %s135
        %s137 = sand.u32 %s40, 1
        %s138 = smul.addr %s137, 8
        %s139 = scalar_lea.vmem [#allocation2], %s138
        %p140 = pneg %p53
        %p141 = pneg %p50
        %p142 = pneg %p79
        %p143 = pneg %p76
        %s144 = sand.u32 %s66, 1
        %s145 = scalar_lea.sflag [#allocation4], %s144
        %s146 = sand.u32 %s66, 1
        %s147 = smul.addr %s146, 2
        %s148 = scalar_lea.vmem [#allocation5], %s147
        %s149 = smul.u32 2, %s23
        %v150 = vld [vmem:[%s130] sm:$0xff]
        %v152 = vcombine.high %v150, %v150
        %vm154 = vcmask 1043456
        %v155 = vsel %vm154, %v150, 0.0
        %v156 = vsel %vm154, %v152, 0.0
        %v157 = vadd.f32 %v155, %v156
        %158 = vadd.xlane.f32.xlu0 %v157
        %v159 = vpop.xlane.xlu0 %158
        %v160 = vsel %vm154, %v150, -inf
        %v161 = vsel %vm154, %v152, -inf
        %v162 = vmax.f32 %v160, %v161
        %163 = vmax.xlane.f32.xlu0 %v162
        %v164 = vpop.xlane.xlu0 %163
        %p165 = scmp.eq.s32.totalorder %s23, 0
        // Predicated region
        $region29: #{tpu_custom_call.1} parent=23 // pred_check
          %p166 = pneg %p165
        $region30: #{tpu_custom_call.1} parent=23 // pred_check_branch
          %168 = sbr.rel (%p166) target = $region32
        $region31: #{tpu_custom_call.1} parent=23 // pred_region
          %v170 = vlaneseq
          %v171 = vand.u32 %v170, 127
          %v172 = vlaneseq
          %v173 = vshrl.u32 %v172, 7
          %v174 = vsub.s32 %v171, %v173
          %v175 = vrot.slane %v159, %v174
          %vm177 = vcmask 24576
          %178 = vst.msk [vmem:[%s148] sm:$0x1] %vm177, %v175
          %v180 = vlaneseq
          %v181 = vshrl.u32 %v180, 7
          %v182 = vsub.s32 %v171, %v181
          %v183 = vrot.slane %v164, %v182
          %185 = vst.msk [vmem:[%s148 + $0x1] sm:$0x1] %vm177, %v183
        $region32: #{tpu_custom_call.1} parent=23 // pred_fallthru
          _
        %p186 = scmp.gt.s32.totalorder %s23, 0
        // Predicated region
        $region33: #{tpu_custom_call.1} parent=23 // pred_check
          %p187 = pneg %p186
        $region34: #{tpu_custom_call.1} parent=23 // pred_check_branch
          %189 = sbr.rel (%p187) target = $region36
        $region35: #{tpu_custom_call.1} parent=23 // pred_region
          %v190 = vld [vmem:[%s148] sm:$0x1]
          %v192 = vlaneseq
          %v193 = vand.u32 %v192, 127
          %v194 = vlaneseq
          %v195 = vshrl.u32 %v194, 7
          %v196 = vsub.s32 %v193, %v195
          %v197 = vrot.slane %v159, %v196
          %v199 = vadd.f32 %v190, %v197
          %vm200 = vcmask 24576
          %201 = vst.msk [vmem:[%s148] sm:$0x1] %vm200, %v199
          %v202 = vld [vmem:[%s148 + $0x1] sm:$0x1]
          %v204 = vlaneseq
          %v205 = vshrl.u32 %v204, 7
          %v206 = vsub.s32 %v193, %v205
          %v207 = vrot.slane %v164, %v206
          %v209 = vmax.f32 %v202, %v207
          %210 = vst.msk [vmem:[%s148 + $0x1] sm:$0x1] %vm200, %v209
        $region36: #{tpu_custom_call.1} parent=23 // pred_fallthru
          _
        // Predicated region
        $region37: #{tpu_custom_call.1} parent=23 // pred_check
          %p211 = pneg %p165
        $region38: #{tpu_custom_call.1} parent=23 // pred_check_branch
          %213 = sbr.rel (%p211) target = $region40
        $region39: #{tpu_custom_call.1} parent=23 // pred_region
          %v214 = vld [vmem:[%s148] sm:$0x1]
          %v215 = vmul.f32 %v214, 0.00390625
          %vm216 = vcmask 24576
          %217 = vst.msk [vmem:[%s148] sm:$0x1] %vm216, %v215
        $region40: #{tpu_custom_call.1} parent=23 // pred_fallthru
          _
        %s218 = sand.u32 %s66, 1
        %s219 = scalar_lea.sflag [#allocation4], %s218
        %s220 = sand.u32 %s66, 1
        %s221 = smul.addr %s220, 2
        %s222 = scalar_lea.vmem [#allocation5], %s221
        // Predicated region
        $region41: #{tpu_custom_call.1} parent=23 // pred_check
          %p223 = pneg %p76
        $region42: #{tpu_custom_call.1} parent=23 // pred_check_branch
          %225 = sbr.rel (%p223) target = $region44
        $region43: #{tpu_custom_call.1} parent=23 // pred_region
          %s227 = ssub.s32 32, 32
          %228 = vsyncadd %s219, %s227
          %s229 = smul.addr %s22, 32
          %s230 = scalar_lea.hbm %s1, %s229
          %s232 = sshll.u32 %s222, 4
          %s233 = int_to_ptr.vmem [resolvable:$true] %s232
          %235 = dma.vmem_to_hbm [thread:$0]  %s233, 32, %s230, %s219
        $region44: #{tpu_custom_call.1} parent=23 // pred_fallthru
          _
      $region24: #{tpu_custom_call.1} parent=5 // pred_fallthru
        _
      %p236 = scmp.le.s32.totalorder 2, %s13
      // Predicated region
      $region45: #{tpu_custom_call.1} parent=5 // pred_check
        %p237 = pneg %p236
      $region46: #{tpu_custom_call.1} parent=5 // pred_check_branch
        %239 = sbr.rel (%p237) target = $region48
      $region47: #{tpu_custom_call.1} parent=5 // pred_region
        %s240 = ssub.s32 %s13, 2
        // Predicated region
        $region49: #{tpu_custom_call.1} parent=47 // pred_check
          %p241 = pneg %p82
        $region50: #{tpu_custom_call.1} parent=47 // pred_check_branch
          %243 = sbr.rel (%p241) target = $region52
        $region51: #{tpu_custom_call.1} parent=47 // pred_region
          %s244 = sand.u32 %s67, 1
          %s245 = scalar_lea.sflag [#allocation4], %s244
          %s246 = sand.u32 %s67, 1
          %s247 = smul.addr %s246, 2
          %s248 = scalar_lea.vmem [#allocation5], %s247
          %249 = dma.done %s245, 32
        $region52: #{tpu_custom_call.1} parent=47 // pred_fallthru
          _
      $region48: #{tpu_custom_call.1} parent=5 // pred_fallthru
        _
    $region6: #{tpu_custom_call.1} parent=1 // loop_footer
      %s17 = sadd.s32 1, %s13
    $region7: #{tpu_custom_call.1} parent=1 // loop_footer_branch
      %12 = sbr.rel target = $region3
    $region8: #{tpu_custom_call.1} parent=1 // loop_exit
      _
    %250 = vsyncpa [#allocation3], 1
    %s251 = scalar_lea.sflag [#allocation3], 1
    %252 = vsyncpa %s251, 1
    %253 = vsyncpa [#allocation4], 1
    %s254 = scalar_lea.sflag [#allocation4], 1
    %255 = vsyncpa %s254, 1

</llo_original>
